<compile_context>
chip_gen: v7x
topology: tpu7x:2x2x1
jax: 0.10.0
libtpu: 0.0.40
codegen_flags: <defaults>
</compile_context>

<pallas_src>
import jax
import jax.numpy as jnp
from jax import lax
from jax.experimental import pallas as pl
from jax.experimental.pallas import tpu as pltpu


def _round_up(x, m):
    return ((x + m - 1) // m) * m


def cf_scatter_kernel(off_ref, cnt_ref, col_ref, g_ref, w_ref, out_ref, acc_ref):
    # off_ref : (n_item_tiles,) int32  SMEM  first edge-block of item tile i
    # cnt_ref : (n_item_tiles,) int32  SMEM  number of edge-blocks for item tile i
    # col_ref : (tile_nnz, 1)   int32        destination item per edge (sentinel on pad)
    # g_ref   : (C_pad, tile_nnz) bf16       user_emb[row]^T for this edge block
    # w_ref   : (C_pad, 1)      f32          weight[0] as a column
    # out_ref : (C_pad, tile_items) f32      transposed output tile
    # acc_ref : (C_pad, tile_items) f32      resident VMEM accumulator
    i = pl.program_id(0)
    k = pl.program_id(1)

    @pl.when(k == 0)
    def _():
        acc_ref[...] = jnp.zeros_like(acc_ref)

    @pl.when(k < cnt_ref[i])
    def _():
        tile_nnz = col_ref.shape[0]
        tile_items = out_ref.shape[1]
        # relative item index of each edge inside this item tile
        # (cheap (tile_nnz, 1) subtract; the big iota stays grid-invariant)
        rel = col_ref[...] - i * tile_items                          # (tile_nnz, 1)
        item_iota = lax.broadcasted_iota(jnp.int32, (tile_nnz, tile_items), 1)
        onehot_t = (item_iota == rel).astype(jnp.bfloat16)           # exact 0/1
        acc_ref[...] += jnp.dot(g_ref[...], onehot_t,
                                preferred_element_type=jnp.float32)

    @pl.when(k == pl.num_programs(1) - 1)
    def _():
        # per-channel weight scale hoisted after the scatter-sum (f32)
        out_ref[...] = acc_ref[...] * w_ref[...]


def cf_module_forward(user_emb, mat_row, mat_col, weight, n_items,
                      *, tile_items=256, tile_nnz=512):
    """JAX wrapper mirroring CFModule.forward.

    user_emb: (n_users, C) f32
    mat_row / mat_col: (nnz,) int32 indices of the sparse interaction matrix
    weight: (n_w, C) f32 (only weight[0] is used, as in the PyTorch module)

    NOTE: the grid / CSR grouping is derived from the (static) sparsity
    pattern, so this wrapper expects concrete mat_row/mat_col (precompute the
    grouping once outside jit for a static interaction matrix).
    """
    n_users, channel = user_emb.shape
    nnz = int(mat_row.shape[0])

    user_emb = user_emb.astype(jnp.float32)
    mat_row = mat_row.astype(jnp.int32)
    mat_col = mat_col.astype(jnp.int32)
    w0 = weight[0].astype(jnp.float32)

    # ---------------- tile geometry ----------------
    c_pad = _round_up(channel, 16)                     # sublane axis only; no 128-pad
    tile_items_eff = min(_round_up(tile_items, 128), _round_up(n_items, 128))
    n_items_pad = _round_up(n_items, tile_items_eff)
    n_item_tiles = n_items_pad // tile_items_eff
    tile_nnz_eff = min(_round_up(tile_nnz, 128), _round_up(nnz, 128))
    nnz_pad = _round_up(nnz, tile_nnz_eff)
    n_edge_blocks = nnz_pad // tile_nnz_eff

    # ---------------- group edges by destination item (CSR-style) ----------------
    order = jnp.argsort(mat_col)
    sorted_col = mat_col[order]
    sorted_row = mat_row[order]

    sentinel = jnp.int32(n_items_pad)                  # never matches any item tile
    col_p = jnp.full((nnz_pad,), sentinel, jnp.int32).at[:nnz].set(sorted_col)
    row_p = jnp.zeros((nnz_pad,), jnp.int32).at[:nnz].set(sorted_row)

    # gather straight into the transposed bf16 layout (C_pad, nnz_pad):
    # no extra full-size f32 materialization in the wrapper.
    ue_t = user_emb.T.astype(jnp.bfloat16)             # (C, n_users), tiny
    gathered_t = jnp.take(ue_t, row_p, axis=1)         # (C, nnz_pad) bf16
    if c_pad != channel:
        gathered_t = jnp.pad(gathered_t, ((0, c_pad - channel), (0, 0)))

    col_2d = col_p.reshape(nnz_pad, 1)
    w_col = jnp.zeros((c_pad, 1), jnp.float32).at[:channel, 0].set(w0)

    # per-item-tile edge-block offsets / counts (scalar-prefetched into SMEM)
    tile_bounds = jnp.arange(n_item_tiles + 1, dtype=jnp.int32) * tile_items_eff
    edge_bounds = jnp.searchsorted(sorted_col, tile_bounds).astype(jnp.int32)
    start, end = edge_bounds[:-1], edge_bounds[1:]
    blk_start = start // tile_nnz_eff
    blk_end = (end + tile_nnz_eff - 1) // tile_nnz_eff
    counts = jnp.where(end > start, blk_end - blk_start, 0).astype(jnp.int32)
    offsets = jnp.minimum(blk_start, n_edge_blocks - 1).astype(jnp.int32)

    # grid extent along k = max number of blocks any item tile touches
    max_k = max(int(jnp.max(counts)), 1)
    total_blocks = max(int(jnp.sum(counts)), 1)

    def _edge_block(i, k, off_ref, cnt_ref):
        # clamp skipped steps to the previous block index -> no DMA re-issue
        kk = jnp.minimum(k, jnp.maximum(cnt_ref[i] - 1, 0))
        return off_ref[i] + kk

    grid = (n_item_tiles, max_k)

    # advisory cost (now ~1x the useful traffic, not replicated per item tile)
    flops = 2 * c_pad * tile_items_eff * tile_nnz_eff * total_blocks
    bytes_accessed = (2 * c_pad * tile_nnz_eff * total_blocks     # gathered (bf16)
                      + 4 * tile_nnz_eff * total_blocks           # column indices
                      + 4 * c_pad * n_items_pad)                  # output

    # VMEM budget derived per generation (v7x has only 64 MiB)
    vmem_cap = 128 * 1024 * 1024
    try:
        vmem_cap = int(getattr(pltpu.get_tpu_info(), "vmem_capacity_bytes", vmem_cap))
    except Exception:
        pass
    vmem_need = (
        2 * 2 * c_pad * tile_nnz_eff            # gathered_T double-buffer (bf16)
        + 2 * 4 * tile_nnz_eff * 128            # col double-buffer (lane-padded i32)
        + 2 * 4 * c_pad * 128                   # weight column
        + 2 * 4 * c_pad * tile_items_eff        # output double-buffer
        + 4 * c_pad * tile_items_eff            # accumulator scratch
        + 2 * tile_nnz_eff * tile_items_eff     # bf16 one-hot intermediate
    )
    vmem_limit = int(min(max(2 * vmem_need, 16 * 1024 * 1024), (3 * vmem_cap) // 4))

    out_t = pl.pallas_call(
        cf_scatter_kernel,
        out_shape=jax.ShapeDtypeStruct((c_pad, n_items_pad), jnp.float32),
        grid_spec=pltpu.PrefetchScalarGridSpec(
            num_scalar_prefetch=2,
            grid=grid,
            in_specs=[
                pl.BlockSpec((tile_nnz_eff, 1),
                             lambda i, k, off, cnt: (_edge_block(i, k, off, cnt), 0)),
                pl.BlockSpec((c_pad, tile_nnz_eff),
                             lambda i, k, off, cnt: (0, _edge_block(i, k, off, cnt))),
                pl.BlockSpec((c_pad, 1),
                             lambda i, k, off, cnt: (0, 0)),
            ],
            out_specs=pl.BlockSpec((c_pad, tile_items_eff),
                                   lambda i, k, off, cnt: (0, i)),
            scratch_shapes=[pltpu.VMEM((c_pad, tile_items_eff), jnp.float32)],
        ),
        compiler_params=pltpu.CompilerParams(
            dimension_semantics=("parallel", "arbitrary"),
            vmem_limit_bytes=vmem_limit,
        ),
        cost_estimate=pl.CostEstimate(flops=int(flops), transcendentals=0,
                                      bytes_accessed=int(bytes_accessed)),
    )(offsets, counts, col_2d, gathered_t, w_col)

    # transpose the lane-dense (C, items) result back to (items, C)
    return out_t[:channel, :n_items].T


def _check(key, n_users, n_items, channel, nnz, tile_items, tile_nnz):
    k1, k2, k3, k4 = jax.random.split(key, 4)
    user_emb = jax.random.normal(k1, (n_users, channel), dtype=jnp.float32)
    weight = jax.random.normal(k2, (3, channel), dtype=jnp.float32)
    mat_row = jax.random.randint(k3, (nnz,), 0, n_users, dtype=jnp.int32)
    mat_col = jax.random.randint(k4, (nnz,), 0, n_items, dtype=jnp.int32)

    out = cf_module_forward(user_emb, mat_row, mat_col, weight, n_items,
                            tile_items=tile_items, tile_nnz=tile_nnz)
    out = jax.block_until_ready(out)
    assert out.shape == (n_items, channel)

    # strict reference with bf16-rounded gathered values (kernel streams bf16,
    # accumulates f32, weight scale applied in f32)
    ue_q = user_emb.astype(jnp.bfloat16).astype(jnp.float32)
    ref_q = jax.ops.segment_sum(ue_q[mat_row] * weight[0], mat_col,
                                num_segments=n_items)
    assert jnp.allclose(out, ref_q, atol=1e-4, rtol=1e-4), (
        float(jnp.max(jnp.abs(out - ref_q))))

    # sanity check against the full f32 PyTorch-equivalent reference
    ref = jax.ops.segment_sum(user_emb[mat_row] * weight[0], mat_col,
                              num_segments=n_items)
    assert jnp.allclose(out, ref, atol=1e-1, rtol=1e-1), (
        float(jnp.max(jnp.abs(out - ref))))


if __name__ == "__main__":
    key = jax.random.PRNGKey(0)
    ka, kb = jax.random.split(key, 2)

    # tiny case: single item tile, multi-block reduction axis
    _check(ka, n_users=32, n_items=48, channel=32, nnz=300,
           tile_items=128, tile_nnz=128)

    # grouped-grid case: multiple item tiles exercise the data-dependent
    # (offset[i] + k) index maps and the pl.when(k < count[i]) tail guards
    _check(kb, n_users=64, n_items=300, channel=32, nnz=2000,
           tile_items=128, tile_nnz=256)

    print("KERNEL_OK")
</pallas_src>

<mosaic_0001>
module attributes {stable_mosaic.version = 11 : i64} {
  func.func @cf_scatter_kernel(%arg0: i32, %arg1: i32, %arg2: memref<1xi32, #tpu.memory_space<smem>>, %arg3: memref<1xi32, #tpu.memory_space<smem>>, %arg4: memref<128x1xi32, #tpu.memory_space<vmem>>, %arg5: memref<32x128xbf16, #tpu.memory_space<vmem>>, %arg6: memref<32x1xf32, #tpu.memory_space<vmem>>, %arg7: memref<32x128xf32, #tpu.memory_space<vmem>>, %arg8: memref<32x128xf32, #tpu.memory_space<vmem>>) attributes {dimension_semantics = [#tpu.dimension_semantics<parallel>, #tpu.dimension_semantics<arbitrary>], iteration_bounds = array<i64: 1, 3>, scalar_prefetch = 2 : i64, scratch_operands = 1 : i64, tpu.core_type = #tpu.core_type<tc>, window_params = [{transform_indices = @transform_0, window_bounds = array<i64: 128, 1>}, {transform_indices = @transform_1, window_bounds = array<i64: 32, 128>}, {pipeline_mode = #tpu.pipeline_mode<synchronous>, transform_indices = @transform_2, window_bounds = array<i64: 32, 1>}, {transform_indices = @transform_3, window_bounds = array<i64: 32, 128>}]} {
    %c0_i32 = arith.constant 0 : i32
    %0 = arith.cmpi eq, %arg1, %c0_i32 : i32
    %1 = arith.extui %0 : i1 to i32
    %c0_i32_0 = arith.constant 0 : i32
    %2 = arith.cmpi ne, %1, %c0_i32_0 : i32
    scf.if %2 {
      %cst = arith.constant 0.000000e+00 : f32
      %11 = vector.broadcast %cst : f32 to vector<32x128xf32>
      %c0 = arith.constant 0 : index
      %c0_3 = arith.constant 0 : index
      %12 = vector.load %arg8[%c0, %c0_3] : memref<32x128xf32, #tpu.memory_space<vmem>>, vector<32x128xf32>
      tpu.vector_store %arg8[%c0, %c0_3], %11 {strides = array<i32>} : memref<32x128xf32, #tpu.memory_space<vmem>>, vector<32x128xf32>,
    } else {
    }
    %3 = arith.index_cast %arg0 : i32 to index
    %4 = memref.load %arg3[%3] : memref<1xi32, #tpu.memory_space<smem>>
    %5 = arith.cmpi slt, %arg1, %4 : i32
    %6 = arith.extui %5 : i1 to i32
    %c0_i32_1 = arith.constant 0 : i32
    %7 = arith.cmpi ne, %6, %c0_i32_1 : i32
    scf.if %7 {
      %c0 = arith.constant 0 : index
      %c0_3 = arith.constant 0 : index
      %11 = vector.load %arg4[%c0, %c0_3] : memref<128x1xi32, #tpu.memory_space<vmem>>, vector<128x1xi32>
      %c128_i32 = arith.constant 128 : i32
      %12 = arith.muli %arg0, %c128_i32 : i32
      %13 = vector.broadcast %12 : i32 to vector<128x1xi32>
      %14 = arith.subi %11, %13 : vector<128x1xi32>
      %15 = tpu.iota {dimensions = array<i32: 1>} : vector<128x128xi32>
      %16 = vector.broadcast %14 : vector<128x1xi32> to vector<128x128xi32>
      %17 = arith.cmpi eq, %15, %16 : vector<128x128xi32>
      %18 = arith.extui %17 : vector<128x128xi1> to vector<128x128xi32>
      %19 = arith.sitofp %18 : vector<128x128xi32> to vector<128x128xf32>
      %20 = arith.truncf %19 : vector<128x128xf32> to vector<128x128xbf16>
      %c0_4 = arith.constant 0 : index
      %c0_5 = arith.constant 0 : index
      %21 = vector.load %arg8[%c0_4, %c0_5] : memref<32x128xf32, #tpu.memory_space<vmem>>, vector<32x128xf32>
      %c0_6 = arith.constant 0 : index
      %c0_7 = arith.constant 0 : index
      %22 = vector.load %arg5[%c0_6, %c0_7] : memref<32x128xbf16, #tpu.memory_space<vmem>>, vector<32x128xbf16>
      %cst = arith.constant dense<0.000000e+00> : vector<32x128xf32>
      %23 = tpu.matmul %22, %20, %cst {dimension_numbers = #tpu.dot_dimension_numbers<[1], [0], [0], [1], [0, 0, 1, 1], [], []>} : vector<32x128xbf16>, vector<128x128xbf16>, vector<32x128xf32> -> vector<32x128xf32>
      %24 = arith.addf %21, %23 : vector<32x128xf32>
      %c0_8 = arith.constant 0 : index
      %c0_9 = arith.constant 0 : index
      %25 = vector.load %arg8[%c0_8, %c0_9] : memref<32x128xf32, #tpu.memory_space<vmem>>, vector<32x128xf32>
      tpu.vector_store %arg8[%c0_8, %c0_9], %24 {strides = array<i32>} : memref<32x128xf32, #tpu.memory_space<vmem>>, vector<32x128xf32>,
    } else {
    }
    %c2_i32 = arith.constant 2 : i32
    %8 = arith.cmpi eq, %arg1, %c2_i32 : i32
    %9 = arith.extui %8 : i1 to i32
    %c0_i32_2 = arith.constant 0 : i32
    %10 = arith.cmpi ne, %9, %c0_i32_2 : i32
    scf.if %10 {
      %c0 = arith.constant 0 : index
      %c0_3 = arith.constant 0 : index
      %11 = vector.load %arg8[%c0, %c0_3] : memref<32x128xf32, #tpu.memory_space<vmem>>, vector<32x128xf32>
      %c0_4 = arith.constant 0 : index
      %c0_5 = arith.constant 0 : index
      %12 = vector.load %arg6[%c0_4, %c0_5] : memref<32x1xf32, #tpu.memory_space<vmem>>, vector<32x1xf32>
      %13 = vector.broadcast %12 : vector<32x1xf32> to vector<32x128xf32>
      %14 = arith.mulf %11, %13 : vector<32x128xf32>
      %c0_6 = arith.constant 0 : index
      %c0_7 = arith.constant 0 : index
      %15 = vector.load %arg7[%c0_6, %c0_7] : memref<32x128xf32, #tpu.memory_space<vmem>>, vector<32x128xf32>
      tpu.vector_store %arg7[%c0_6, %c0_7], %14 {strides = array<i32>} : memref<32x128xf32, #tpu.memory_space<vmem>>, vector<32x128xf32>,
    } else {
    }
    return
  }
  func.func @transform_0(%arg0: i32, %arg1: i32, %arg2: memref<1xi32, #tpu.memory_space<smem>>, %arg3: memref<1xi32, #tpu.memory_space<smem>>) -> (i32, i32) {
    %0 = arith.index_cast %arg0 : i32 to index
    %1 = memref.load %arg3[%0] : memref<1xi32, #tpu.memory_space<smem>>
    %c1_i32 = arith.constant 1 : i32
    %2 = arith.subi %1, %c1_i32 : i32
    %c0_i32 = arith.constant 0 : i32
    %3 = arith.maxsi %2, %c0_i32 : i32
    %4 = arith.minsi %arg1, %3 : i32
    %5 = arith.index_cast %arg0 : i32 to index
    %6 = memref.load %arg2[%5] : memref<1xi32, #tpu.memory_space<smem>>
    %7 = arith.addi %6, %4 : i32
    %c0_i32_0 = arith.constant 0 : i32
    %c0_i32_1 = arith.constant 0 : i32
    return %7, %c0_i32_0 : i32, i32
  }
  func.func @transform_1(%arg0: i32, %arg1: i32, %arg2: memref<1xi32, #tpu.memory_space<smem>>, %arg3: memref<1xi32, #tpu.memory_space<smem>>) -> (i32, i32) {
    %0 = arith.index_cast %arg0 : i32 to index
    %1 = memref.load %arg3[%0] : memref<1xi32, #tpu.memory_space<smem>>
    %c1_i32 = arith.constant 1 : i32
    %2 = arith.subi %1, %c1_i32 : i32
    %c0_i32 = arith.constant 0 : i32
    %3 = arith.maxsi %2, %c0_i32 : i32
    %4 = arith.minsi %arg1, %3 : i32
    %5 = arith.index_cast %arg0 : i32 to index
    %6 = memref.load %arg2[%5] : memref<1xi32, #tpu.memory_space<smem>>
    %7 = arith.addi %6, %4 : i32
    %c0_i32_0 = arith.constant 0 : i32
    %c0_i32_1 = arith.constant 0 : i32
    return %c0_i32_0, %7 : i32, i32
  }
  func.func @transform_2(%arg0: i32, %arg1: i32, %arg2: memref<1xi32, #tpu.memory_space<smem>>, %arg3: memref<1xi32, #tpu.memory_space<smem>>) -> (i32, i32) {
    %c0_i32 = arith.constant 0 : i32
    %c0_i32_0 = arith.constant 0 : i32
    %c0_i32_1 = arith.constant 0 : i32
    return %c0_i32, %c0_i32_0 : i32, i32
  }
  func.func @transform_3(%arg0: i32, %arg1: i32, %arg2: memref<1xi32, #tpu.memory_space<smem>>, %arg3: memref<1xi32, #tpu.memory_space<smem>>) -> (i32, i32) {
    %c0_i32 = arith.constant 0 : i32
    %c0_i32_0 = arith.constant 0 : i32
    return %c0_i32, %arg0 : i32, i32
  }
}

</mosaic_0001>

<llo_original>
// kernel: tpu_custom_call.1
$region0: #{tpu_custom_call.1}
  #allocation0 [shape = 'u32[]', space=smem, size = 0x4, offset = 0x4, fixed_abs, tag = 'smem constant byte address 0x4 - core index']
  #allocation1 [shape = 'u32[144,128]{1,0:T(1,128)}', space=vmem, size = 0x12000, scoped, tag = 'internal scratch']
  #allocation2 [shape = 'f32[32,128]{1,0:T(8,128)}', space=vmem, size = 0x4000, scoped, tag = 'scratch operand']
  #allocation3 [shape = 's32[1]{0}', space=sflag, size = 0x4, scoped, tag = 'scoped memory for tpu_custom_call.1']
  #allocation4 [shape = 's32[1]{0:T(128)S(6)}', space=smem, size = 0x200, scoped, tag = 'prefetched SMEM operand 0']
  #allocation5 [shape = 's32[1]{0:T(128)S(6)}', space=smem, size = 0x200, scoped, tag = 'prefetched SMEM operand 1']
  %s0 = inlined_call_operand.<no memory space> [shape: s32[1], index: 0, kind: input, shape index: {}]
  %s1 = inlined_call_operand.<no memory space> [shape: s32[1], index: 1, kind: input, shape index: {}]
  %s2 = inlined_call_operand.vmem [shape: s32[384,1], index: 2, kind: input, shape index: {}]
  %s3 = inlined_call_operand.vmem [shape: bf16[32,384], index: 3, kind: input, shape index: {}]
  %s4 = inlined_call_operand.vmem [shape: f32[32,1], index: 4, kind: input, shape index: {}]
  %s5 = inlined_call_operand.hbm [shape: f32[32,128], index: 5, kind: output, shape index: {}]
  %s6 = sld [smem:[#allocation0]]
  $region98: #{tpu_custom_call.1} parent=0
    _
  %s8 = ssub.s32 1, %s6
  %s9 = scalar_select 0, %s8, %s6
  %10 = sst [smem:[#allocation4]] %s0
  %11 = sst [smem:[#allocation5]] %s1
  $region1: #{tpu_custom_call.1} parent=0
    #allocation6 [shape = 'u8[16384]{0}', space=vmem, size = 0x4000, scoped, tag = 'input window, operand 3']
    #allocation7 [shape = 'u8[16384]{0}', space=vmem, size = 0x4000, scoped, tag = 'output window, operand 0, single buffered']
    #allocation8 [shape = 's32[2]{0}', space=sflag, size = 0x8, scoped, tag = 'scoped memory for tpu_custom_call.1']
    %12 = vsyncpa [#allocation8], 0
    loop: start=0, step=1, limit=5
    $region2: #{tpu_custom_call.1} parent=1 // loop_pre_header
      _
    $region3: #{tpu_custom_call.1} parent=1 // loop_header
      %s14 = sphi 0, %s18
      %p15 = scmp.ge.s32.totalorder %s14, 5
      %s21 = sphi 0, %s33
      %s22 = sphi 0, %s29
      %s23 = sphi 0, %s21
      %s24 = sphi 0, %s22
      %s25 = sphi 0, %s23
      %s26 = sphi 0, %s24
      %s52 = sphi 0, %s54
      %s55 = sphi 0, %s52
      %s56 = sphi 0, %s55
      %s72 = sphi 0, %s56
      %s94 = sphi 0, %s96
      %s97 = sphi 0, %s94
      %s98 = sphi 0, %s97
      %s114 = sphi 0, %s98
      %s118 = sphi 0, %s118
      %s120 = sphi 0, %s118
      %s121 = sphi 0, %s120
      %s135 = sphi 0, %s121
      %s141 = sphi 0, %s143
      %s144 = sphi 0, %s141
      %s145 = sphi 0, %s144
      %s161 = sphi 0, %s145
    $region4: #{tpu_custom_call.1} parent=1 // loop_header_branch
      %17 = sbr.rel (%p15) target = $region8
    $region5: #{tpu_custom_call.1} parent=1 // loop_body
      %s19 = ssub.s32 %s14, 1
      %s20 = ssub.s32 %s14, 2
      %s27 = sadd.s32 1, %s22
      %p28 = scmp.ge.s32.totalorder %s27, 3
      %s29 = scalar_select %p28, 0, %s27
      %s30 = sadd.s32 1, %s21
      %s31 = scalar_select %p28, %s30, %s21
      %p32 = scmp.ge.s32.totalorder %s31, 1
      %s33 = scalar_select %p32, 0, %s31
      %s34 = sld [smem:[#allocation5 + %s21]]
      %s35 = ssub.s32 %s34, 1
      %p36 = scmp.gt.s32.totalorder %s35, 0
      %s37 = scalar_select %p36, %s35, 0
      %p38 = scmp.lt.s32.totalorder %s22, %s37
      %s39 = scalar_select %p38, %s22, %s37
      %s40 = sld [smem:[#allocation4 + %s21]]
      %s41 = sadd.s32 %s40, %s39
      %s42 = sld [smem:[#allocation5 + %s33]]
      %s43 = ssub.s32 %s42, 1
      %p44 = scmp.gt.s32.totalorder %s43, 0
      %s45 = scalar_select %p44, %s43, 0
      %p46 = scmp.lt.s32.totalorder %s29, %s45
      %s47 = scalar_select %p46, %s29, %s45
      %s48 = sld [smem:[#allocation4 + %s33]]
      %s49 = sadd.s32 %s48, %s47
      %s50 = ssub.s32 %s41, %s49
      %p51 = scmp.eq.s32.totalorder %s50, 0
      %s53 = sadd.s32 %s52, 1
      %s54 = scalar_select %p51, %s52, %s53
      %p57 = pneg %p51
      %p58 = scmp.eq.s32.totalorder %s14, 2
      %p59 = por %p57, %p58
      %p60 = scmp.ne.s32.totalorder %s52, %s55
      %p61 = scmp.eq.s32.totalorder %s14, 0
      %p62 = por %p60, %p61
      %p63 = scmp.ne.s32.totalorder %s52, %s55
      %p64 = scmp.eq.s32.totalorder %s19, 2
      %p65 = por %p63, %p64
      %p66 = scmp.ne.s32.totalorder %s55, %s56
      %p67 = scmp.eq.s32.totalorder %s19, 0
      %p68 = por %p66, %p67
      %p69 = scmp.ne.s32.totalorder %s55, %s56
      %p70 = scmp.eq.s32.totalorder %s20, 2
      %p71 = por %p69, %p70
      %p73 = scmp.ne.s32.totalorder %s56, %s72
      %p74 = scmp.eq.s32.totalorder %s20, 0
      %p75 = por %p73, %p74
      %s76 = sld [smem:[#allocation5 + %s21]]
      %s77 = ssub.s32 %s76, 1
      %p78 = scmp.gt.s32.totalorder %s77, 0
      %s79 = scalar_select %p78, %s77, 0
      %p80 = scmp.lt.s32.totalorder %s22, %s79
      %s81 = scalar_select %p80, %s22, %s79
      %s82 = sld [smem:[#allocation4 + %s21]]
      %s83 = sadd.s32 %s82, %s81
      %s84 = sld [smem:[#allocation5 + %s33]]
      %s85 = ssub.s32 %s84, 1
      %p86 = scmp.gt.s32.totalorder %s85, 0
      %s87 = scalar_select %p86, %s85, 0
      %p88 = scmp.lt.s32.totalorder %s29, %s87
      %s89 = scalar_select %p88, %s29, %s87
      %s90 = sld [smem:[#allocation4 + %s33]]
      %s91 = sadd.s32 %s90, %s89
      %s92 = ssub.s32 %s83, %s91
      %p93 = scmp.eq.s32.totalorder %s92, 0
      %s95 = sadd.s32 %s94, 1
      %s96 = scalar_select %p93, %s94, %s95
      %p99 = pneg %p93
      %p100 = scmp.eq.s32.totalorder %s14, 2
      %p101 = por %p99, %p100
      %p102 = scmp.ne.s32.totalorder %s94, %s97
      %p103 = scmp.eq.s32.totalorder %s14, 0
      %p104 = por %p102, %p103
      %p105 = scmp.ne.s32.totalorder %s94, %s97
      %p106 = scmp.eq.s32.totalorder %s19, 2
      %p107 = por %p105, %p106
      %p108 = scmp.ne.s32.totalorder %s97, %s98
      %p109 = scmp.eq.s32.totalorder %s19, 0
      %p110 = por %p108, %p109
      %p111 = scmp.ne.s32.totalorder %s97, %s98
      %p112 = scmp.eq.s32.totalorder %s20, 2
      %p113 = por %p111, %p112
      %p115 = scmp.ne.s32.totalorder %s98, %s114
      %p116 = scmp.eq.s32.totalorder %s20, 0
      %p117 = por %p115, %p116
      %s119 = sadd.s32 %s118, 1
      %p122 = scmp.eq.s32.totalorder %s14, 2
      %p123 = scmp.ne.s32.totalorder %s118, %s120
      %p124 = scmp.eq.s32.totalorder %s14, 0
      %p125 = por %p123, %p124
      %p126 = scmp.ne.s32.totalorder %s118, %s120
      %p127 = scmp.eq.s32.totalorder %s19, 2
      %p128 = por %p126, %p127
      %p129 = scmp.ne.s32.totalorder %s120, %s121
      %p130 = scmp.eq.s32.totalorder %s19, 0
      %p131 = por %p129, %p130
      %p132 = scmp.ne.s32.totalorder %s120, %s121
      %p133 = scmp.eq.s32.totalorder %s20, 2
      %p134 = por %p132, %p133
      %p136 = scmp.ne.s32.totalorder %s121, %s135
      %p137 = scmp.eq.s32.totalorder %s20, 0
      %p138 = por %p136, %p137
      %s139 = ssub.s32 %s21, %s33
      %p140 = scmp.eq.s32.totalorder %s139, 0
      %s142 = sadd.s32 %s141, 1
      %s143 = scalar_select %p140, %s141, %s142
      %p146 = pneg %p140
      %p147 = scmp.eq.s32.totalorder %s14, 2
      %p148 = por %p146, %p147
      %p149 = scmp.ne.s32.totalorder %s141, %s144
      %p150 = scmp.eq.s32.totalorder %s14, 0
      %p151 = por %p149, %p150
      %p152 = scmp.ne.s32.totalorder %s141, %s144
      %p153 = scmp.eq.s32.totalorder %s19, 2
      %p154 = por %p152, %p153
      %p155 = scmp.ne.s32.totalorder %s144, %s145
      %p156 = scmp.eq.s32.totalorder %s19, 0
      %p157 = por %p155, %p156
      %p158 = scmp.ne.s32.totalorder %s144, %s145
      %p159 = scmp.eq.s32.totalorder %s20, 2
      %p160 = por %p158, %p159
      %p162 = scmp.ne.s32.totalorder %s145, %s161
      %p163 = scmp.eq.s32.totalorder %s20, 0
      %p164 = por %p162, %p163
      %p165 = scmp.le.s32.totalorder 1, %s14
      %p166 = scmp.lt.s32.totalorder %s14, 4
      %p167 = pnand %p165, %p166
      %p168 = pneg %p167
      // Predicated region
      $region9: #{tpu_custom_call.1} parent=5 // pred_check
        _
      $region10: #{tpu_custom_call.1} parent=5 // pred_check_branch
        %170 = sbr.rel (%p167) target = $region12
      $region11: #{tpu_custom_call.1} parent=5 // pred_region
        %s171 = ssub.s32 %s14, 1
        // Predicated region
        $region13: #{tpu_custom_call.1} parent=11 // pred_check
          %p172 = pneg %p131
        $region14: #{tpu_custom_call.1} parent=11 // pred_check_branch
          %174 = sbr.rel (%p172) target = $region16
        $region15: #{tpu_custom_call.1} parent=11 // pred_region
          _
        $region16: #{tpu_custom_call.1} parent=11 // pred_fallthru
          _
      $region12: #{tpu_custom_call.1} parent=5 // pred_fallthru
        _
      %p175 = scmp.lt.s32.totalorder %s14, 3
      // Predicated region
      $region17: #{tpu_custom_call.1} parent=5 // pred_check
        %p176 = pneg %p175
      $region18: #{tpu_custom_call.1} parent=5 // pred_check_branch
        %178 = sbr.rel (%p176) target = $region20
      $region19: #{tpu_custom_call.1} parent=5 // pred_region
        // Predicated region
        $region21: #{tpu_custom_call.1} parent=19 // pred_check
          %p179 = pneg %p62
        $region22: #{tpu_custom_call.1} parent=19 // pred_check_branch
          %181 = sbr.rel (%p179) target = $region24
        $region23: #{tpu_custom_call.1} parent=19 // pred_region
          %s182 = sld [smem:[#allocation5 + %s21]]
          %s183 = ssub.s32 %s182, 1
          %p184 = scmp.gt.s32.totalorder %s183, 0
          %s185 = scalar_select %p184, %s183, 0
          %p186 = scmp.lt.s32.totalorder %s22, %s185
          %s187 = scalar_select %p186, %s22, %s185
          %s188 = sld [smem:[#allocation4 + %s21]]
          %s189 = sadd.s32 %s188, %s187
          %s190 = smul.u32 16, %s189
          %p191 = scmp.lt.s32.totalorder %s190, 47
          %s192 = scalar_select %p191, %s190, 47
          %s193 = smul.addr %s192, 8
          %s194 = scalar_lea.vmem %s2, %s193
          %s195 = sld [smem:[#allocation5 + %s21]]
          %s196 = ssub.s32 %s195, 1
          %p197 = scmp.gt.s32.totalorder %s196, 0
          %s198 = scalar_select %p197, %s196, 0
          %p199 = scmp.lt.s32.totalorder %s22, %s198
          %s200 = scalar_select %p199, %s22, %s198
          %s201 = sld [smem:[#allocation4 + %s21]]
          %s202 = sadd.s32 %s201, %s200
          %s203 = smul.u32 16, %s202
        $region24: #{tpu_custom_call.1} parent=19 // pred_fallthru
          _
        // Predicated region
        $region25: #{tpu_custom_call.1} parent=19 // pred_check
          %p204 = pneg %p104
        $region26: #{tpu_custom_call.1} parent=19 // pred_check_branch
          %206 = sbr.rel (%p204) target = $region28
        $region27: #{tpu_custom_call.1} parent=19 // pred_region
          %s207 = sand.u32 %s94, 1
          %s208 = sand.u32 %s94, 1
          %s209 = smul.addr %s208, 16
          %s210 = scalar_lea.vmem [#allocation6], %s209
          %s211 = sld [smem:[#allocation5 + %s21]]
          %s212 = ssub.s32 %s211, 1
          %p213 = scmp.gt.s32.totalorder %s212, 0
          %s214 = scalar_select %p213, %s212, 0
          %p215 = scmp.lt.s32.totalorder %s22, %s214
          %s216 = scalar_select %p215, %s22, %s214
          %s217 = sld [smem:[#allocation4 + %s21]]
          %s218 = sadd.s32 %s217, %s216
          %s219 = smul.addr %s218, 4
          %s220 = scalar_lea.vmem %s3, %s219
          // Predicated region
          $region29: #{tpu_custom_call.1} parent=27 // pred_check
            _
          $region30: #{tpu_custom_call.1} parent=27 // pred_check_branch
            %222 = sbr.rel (0) target = $region32
          $region31: #{tpu_custom_call.1} parent=27 // pred_region
            // Predicated region
            $region33: #{tpu_custom_call.1} parent=31 // pred_check
              _
            $region34: #{tpu_custom_call.1} parent=31 // pred_check_branch
              %224 = sbr.rel target = $region36
            $region35: #{tpu_custom_call.1} parent=31 // pred_region
              // Predicated region
              $region48: #{tpu_custom_call.1} parent=35 // pred_check
                _
              $region49: #{tpu_custom_call.1} parent=35 // pred_check_branch
                %245 = sbr.rel (0) target = $region51
              $region50: #{tpu_custom_call.1} parent=35 // pred_region
                loop: start=0, step=1, limit=1
                $region52: #{tpu_custom_call.1} parent=50 // loop_pre_header
                  _
                $region53: #{tpu_custom_call.1} parent=50 // loop_header
                  %s247 = sphi 0, %s251
                  %p248 = scmp.ge.s32.totalorder %s247, 1
                  %s252 = sphi %s220, %s220
                  %s253 = sphi %s210, %s210
                $region54: #{tpu_custom_call.1} parent=50 // loop_header_branch
                  %250 = sbr.rel (%p248) target = $region58
                $region55: #{tpu_custom_call.1} parent=50 // loop_body
                  _
                $region56: #{tpu_custom_call.1} parent=50 // loop_footer
                  %s251 = sadd.s32 1, %s247
                $region57: #{tpu_custom_call.1} parent=50 // loop_footer_branch
                  %246 = sbr.rel target = $region53
                $region58: #{tpu_custom_call.1} parent=50 // loop_exit
                  _
                loop: start=0, step=1, limit=1
                $region59: #{tpu_custom_call.1} parent=50 // loop_pre_header
                  _
                $region60: #{tpu_custom_call.1} parent=50 // loop_header
                  %s256 = sphi 0, %s260
                  %p257 = scmp.ge.s32.totalorder %s256, 1
                  %s261 = sphi %s220, %s220
                  %s262 = sphi %s210, %s210
                $region61: #{tpu_custom_call.1} parent=50 // loop_header_branch
                  %259 = sbr.rel (%p257) target = $region65
                $region62: #{tpu_custom_call.1} parent=50 // loop_body
                  %v263 = vld [vmem:[%s261] sm:$0xf]
                  %264 = vst [vmem:[%s262] sm:$0xf] %v263
                  %v265 = vld [vmem:[%s261 + $0xc] sm:$0xf]
                  %266 = vst [vmem:[%s262 + $0x4] sm:$0xf] %v265
                  %v267 = vld [vmem:[%s261 + $0x18] sm:$0xf]
                  %268 = vst [vmem:[%s262 + $0x8] sm:$0xf] %v267
                  %v269 = vld [vmem:[%s261 + $0x24] sm:$0xf]
                  %270 = vst [vmem:[%s262 + $0xc] sm:$0xf] %v269
                $region63: #{tpu_custom_call.1} parent=50 // loop_footer
                  %s260 = sadd.s32 1, %s256
                $region64: #{tpu_custom_call.1} parent=50 // loop_footer_branch
                  %255 = sbr.rel target = $region60
                $region65: #{tpu_custom_call.1} parent=50 // loop_exit
                  _
              $region51: #{tpu_custom_call.1} parent=35 // pred_fallthru
                _
            $region36: #{tpu_custom_call.1} parent=31 // pred_fallthru
              _
            // Predicated region
            $region37: #{tpu_custom_call.1} parent=31 // pred_check
              _
            $region38: #{tpu_custom_call.1} parent=31 // pred_check_branch
              %226 = sbr.rel (0) target = $region40
            $region39: #{tpu_custom_call.1} parent=31 // pred_region
              loop: start=0, step=1, limit=1
              $region41: #{tpu_custom_call.1} parent=39 // loop_pre_header
                _
              $region42: #{tpu_custom_call.1} parent=39 // loop_header
                %s229 = sphi 0, %s233
                %p230 = scmp.ge.s32.totalorder %s229, 1
                %s234 = sphi %s220, %s220
                %s235 = sphi %s210, %s210
              $region43: #{tpu_custom_call.1} parent=39 // loop_header_branch
                %232 = sbr.rel (%p230) target = $region47
              $region44: #{tpu_custom_call.1} parent=39 // loop_body
                %v236 = vld [vmem:[%s234] sm:$0xf]
                %237 = vst [vmem:[%s235] sm:$0xf] %v236
                %v238 = vld [vmem:[%s234 + $0xc] sm:$0xf]
                %239 = vst [vmem:[%s235 + $0x4] sm:$0xf] %v238
                %v240 = vld [vmem:[%s234 + $0x18] sm:$0xf]
                %241 = vst [vmem:[%s235 + $0x8] sm:$0xf] %v240
                %v242 = vld [vmem:[%s234 + $0x24] sm:$0xf]
                %243 = vst [vmem:[%s235 + $0xc] sm:$0xf] %v242
              $region45: #{tpu_custom_call.1} parent=39 // loop_footer
                %s233 = sadd.s32 1, %s229
              $region46: #{tpu_custom_call.1} parent=39 // loop_footer_branch
                %228 = sbr.rel target = $region42
              $region47: #{tpu_custom_call.1} parent=39 // loop_exit
                _
            $region40: #{tpu_custom_call.1} parent=31 // pred_fallthru
              _
          $region32: #{tpu_custom_call.1} parent=27 // pred_fallthru
            _
          %271 = vnop
        $region28: #{tpu_custom_call.1} parent=19 // pred_fallthru
          _
      $region20: #{tpu_custom_call.1} parent=5 // pred_fallthru
        _
      %p272 = scmp.le.s32.totalorder 1, %s14
      %p273 = scmp.lt.s32.totalorder %s14, 4
      %p274 = pnand %p272, %p273
      %p275 = pneg %p274
      // Predicated region
      $region66: #{tpu_custom_call.1} parent=5 // pred_check
        _
      $region67: #{tpu_custom_call.1} parent=5 // pred_check_branch
        %277 = sbr.rel (%p274) target = $region69
      $region68: #{tpu_custom_call.1} parent=5 // pred_region
        %s278 = ssub.s32 %s14, 1
        %s279 = sand.u32 %s97, 1
        %s280 = sand.u32 %s97, 1
        %s281 = smul.addr %s280, 16
        %s282 = scalar_lea.vmem [#allocation6], %s281
        // Predicated region
        $region70: #{tpu_custom_call.1} parent=68 // pred_check
          %p283 = pneg %p110
        $region71: #{tpu_custom_call.1} parent=68 // pred_check_branch
          %285 = sbr.rel (%p283) target = $region73
        $region72: #{tpu_custom_call.1} parent=68 // pred_region
          _
        $region73: #{tpu_custom_call.1} parent=68 // pred_fallthru
          _
        %s286 = sld [smem:[#allocation5 + %s23]]
        %s287 = ssub.s32 %s286, 1
        %p288 = scmp.gt.s32.totalorder %s287, 0
        %s289 = scalar_select %p288, %s287, 0
        %p290 = scmp.lt.s32.totalorder %s24, %s289
        %s291 = scalar_select %p290, %s24, %s289
        %s292 = sld [smem:[#allocation4 + %s23]]
        %s293 = sadd.s32 %s292, %s291
        %s294 = smul.u32 16, %s293
        %p295 = scmp.lt.s32.totalorder %s294, 47
        %s296 = scalar_select %p295, %s294, 47
        %s297 = smul.addr %s296, 8
        %s298 = scalar_lea.vmem %s2, %s297
        %p299 = pneg %p68
        %p300 = pneg %p65
        %s301 = sand.u32 %s97, 1
        %s302 = sand.u32 %s97, 1
        %s303 = smul.addr %s302, 16
        %s304 = scalar_lea.vmem [#allocation6], %s303
        %p305 = pneg %p110
        %p306 = pneg %p107
        %p307 = pneg %p131
        %p308 = pneg %p128
        %p309 = pneg %p157
        %p310 = pneg %p154
        %s311 = sld [smem:[#allocation5 + %s23]]
        %s312 = ssub.s32 %s311, 1
        %p313 = scmp.gt.s32.totalorder %s312, 0
        %s314 = scalar_select %p313, %s312, 0
        %p315 = scmp.lt.s32.totalorder %s24, %s314
        %s316 = scalar_select %p315, %s24, %s314
        %s317 = sld [smem:[#allocation4 + %s23]]
        %s318 = sadd.s32 %s317, %s316
        %s319 = smul.u32 16, %s318
        %p320 = scmp.lt.s32.totalorder %s319, 47
        %s321 = scalar_select %p320, %s319, 47
        %s322 = smul.addr %s321, 8
        %s323 = scalar_lea.vmem %s2, %s322
        %s324 = sld [smem:[#allocation5 + %s23]]
        %s325 = ssub.s32 %s324, 1
        %p326 = scmp.gt.s32.totalorder %s325, 0
        %s327 = scalar_select %p326, %s325, 0
        %p328 = scmp.lt.s32.totalorder %s24, %s327
        %s329 = scalar_select %p328, %s24, %s327
        %s330 = sld [smem:[#allocation4 + %s23]]
        %s331 = sadd.s32 %s330, %s329
        %s332 = smul.u32 16, %s331
        %s333 = sld [smem:[#allocation5 + %s23]]
        %s334 = ssub.s32 %s333, 1
        %p335 = scmp.gt.s32.totalorder %s334, 0
        %s336 = scalar_select %p335, %s334, 0
        %p337 = scmp.lt.s32.totalorder %s24, %s336
        %s338 = scalar_select %p337, %s24, %s336
        %s339 = sld [smem:[#allocation4 + %s23]]
        %s340 = sadd.s32 %s339, %s338
        %p342 = scmp.eq.s32.totalorder %s24, 0
        // Predicated region
        $region74: #{tpu_custom_call.1} parent=68 // pred_check
          %p343 = pneg %p342
        $region75: #{tpu_custom_call.1} parent=68 // pred_check_branch
          %345 = sbr.rel (%p343) target = $region77
        $region76: #{tpu_custom_call.1} parent=68 // pred_region
          %346 = vst [vmem:[#allocation2] sm:$0xff] 0.0
          %347 = vst [vmem:[#allocation2 + $0x8] sm:$0xff] 0.0
          %348 = vst [vmem:[#allocation2 + $0x10] sm:$0xff] 0.0
          %349 = vst [vmem:[#allocation2 + $0x18] sm:$0xff] 0.0
        $region77: #{tpu_custom_call.1} parent=68 // pred_fallthru
          _
        %s350 = sld [smem:[#allocation5 + %s23]]
        %p351 = scmp.lt.s32.totalorder %s24, %s350
        // Predicated region
        $region78: #{tpu_custom_call.1} parent=68 // pred_check
          %p352 = pneg %p351
        $region79: #{tpu_custom_call.1} parent=68 // pred_check_branch
          %354 = sbr.rel (%p352) target = $region81
        $region80: #{tpu_custom_call.1} parent=68 // pred_region
          %v355 = vld [vmem:[%s323] sm:$0xff]
          %v356 = vld [vmem:[%s323 + $0x8] sm:$0xff]
          %v357 = vld [vmem:[%s323 + $0x10] sm:$0xff]
          %v358 = vld [vmem:[%s323 + $0x18] sm:$0xff]
          %v359 = vld [vmem:[%s323 + $0x20] sm:$0xff]
          %v360 = vld [vmem:[%s323 + $0x28] sm:$0xff]
          %v361 = vld [vmem:[%s323 + $0x30] sm:$0xff]
          %v362 = vld [vmem:[%s323 + $0x38] sm:$0xff]
          %v363 = vld [vmem:[%s323 + $0x40] sm:$0xff]
          %v364 = vld [vmem:[%s323 + $0x48] sm:$0xff]
          %v365 = vld [vmem:[%s323 + $0x50] sm:$0xff]
          %v366 = vld [vmem:[%s323 + $0x58] sm:$0xff]
          %v367 = vld [vmem:[%s323 + $0x60] sm:$0xff]
          %v368 = vld [vmem:[%s323 + $0x68] sm:$0xff]
          %v369 = vld [vmem:[%s323 + $0x70] sm:$0xff]
          %v370 = vld [vmem:[%s323 + $0x78] sm:$0xff]
          %s371 = smul.u32 %s23, 128
          %v372 = vstv %s371
          %v373 = vsub.s32 %v355, %v372
          %v374 = vsub.s32 %v356, %v372
          %v375 = vsub.s32 %v357, %v372
          %v376 = vsub.s32 %v358, %v372
          %v377 = vsub.s32 %v359, %v372
          %v378 = vsub.s32 %v360, %v372
          %v379 = vsub.s32 %v361, %v372
          %v380 = vsub.s32 %v362, %v372
          %v381 = vsub.s32 %v363, %v372
          %v382 = vsub.s32 %v364, %v372
          %v383 = vsub.s32 %v365, %v372
          %v384 = vsub.s32 %v366, %v372
          %v385 = vsub.s32 %v367, %v372
          %v386 = vsub.s32 %v368, %v372
          %v387 = vsub.s32 %v369, %v372
          %v388 = vsub.s32 %v370, %v372
          %v389 = vlaneseq
          %v390 = vand.u32 %v389, 127
          %391 = vset.pattern.permute.xlu0 0
          %392 = vperm.xlu0 %391, %v373
          %v393 = vpop.permute.xlu0 %392
          %394 = vset.pattern.permute.xlu0 0
          %395 = vperm.xlu0 %394, %v374
          %v396 = vpop.permute.xlu0 %395
          %397 = vset.pattern.permute.xlu0 0
          %398 = vperm.xlu0 %397, %v375
          %v399 = vpop.permute.xlu0 %398
          %400 = vset.pattern.permute.xlu0 0
          %401 = vperm.xlu0 %400, %v376
          %v402 = vpop.permute.xlu0 %401
          %403 = vset.pattern.permute.xlu0 0
          %404 = vperm.xlu0 %403, %v377
          %v405 = vpop.permute.xlu0 %404
          %406 = vset.pattern.permute.xlu0 0
          %407 = vperm.xlu0 %406, %v378
          %v408 = vpop.permute.xlu0 %407
          %409 = vset.pattern.permute.xlu0 0
          %410 = vperm.xlu0 %409, %v379
          %v411 = vpop.permute.xlu0 %410
          %412 = vset.pattern.permute.xlu0 0
          %413 = vperm.xlu0 %412, %v380
          %v414 = vpop.permute.xlu0 %413
          %415 = vset.pattern.permute.xlu0 0
          %416 = vperm.xlu0 %415, %v381
          %v417 = vpop.permute.xlu0 %416
          %418 = vset.pattern.permute.xlu0 0
          %419 = vperm.xlu0 %418, %v382
          %v420 = vpop.permute.xlu0 %419
          %421 = vset.pattern.permute.xlu0 0
          %422 = vperm.xlu0 %421, %v383
          %v423 = vpop.permute.xlu0 %422
          %424 = vset.pattern.permute.xlu0 0
          %425 = vperm.xlu0 %424, %v384
          %v426 = vpop.permute.xlu0 %425
          %427 = vset.pattern.permute.xlu0 0
          %428 = vperm.xlu0 %427, %v385
          %v429 = vpop.permute.xlu0 %428
          %430 = vset.pattern.permute.xlu0 0
          %431 = vperm.xlu0 %430, %v386
          %v432 = vpop.permute.xlu0 %431
          %433 = vset.pattern.permute.xlu0 0
          %434 = vperm.xlu0 %433, %v387
          %v435 = vpop.permute.xlu0 %434
          %436 = vset.pattern.permute.xlu0 0
          %437 = vperm.xlu0 %436, %v388
          %v438 = vpop.permute.xlu0 %437
          %vm439 = vcmp.eq.s32.totalorder %v390, %v393
          %vm440 = vcmp.eq.s32.totalorder %v390, %v396
          %vm441 = vcmp.eq.s32.totalorder %v390, %v399
          %vm442 = vcmp.eq.s32.totalorder %v390, %v402
          %vm443 = vcmp.eq.s32.totalorder %v390, %v405
          %vm444 = vcmp.eq.s32.totalorder %v390, %v408
          %vm445 = vcmp.eq.s32.totalorder %v390, %v411
          %vm446 = vcmp.eq.s32.totalorder %v390, %v414
          %vm447 = vcmp.eq.s32.totalorder %v390, %v417
          %vm448 = vcmp.eq.s32.totalorder %v390, %v420
          %vm449 = vcmp.eq.s32.totalorder %v390, %v423
          %vm450 = vcmp.eq.s32.totalorder %v390, %v426
          %vm451 = vcmp.eq.s32.totalorder %v390, %v429
          %vm452 = vcmp.eq.s32.totalorder %v390, %v432
          %vm453 = vcmp.eq.s32.totalorder %v390, %v435
          %vm454 = vcmp.eq.s32.totalorder %v390, %v438
          %v455 = vsel %vm439, 1, 0
          %v456 = vsel %vm440, 1, 0
          %v457 = vsel %vm441, 1, 0
          %v458 = vsel %vm442, 1, 0
          %v459 = vsel %vm443, 1, 0
          %v460 = vsel %vm444, 1, 0
          %v461 = vsel %vm445, 1, 0
          %v462 = vsel %vm446, 1, 0
          %v463 = vsel %vm447, 1, 0
          %v464 = vsel %vm448, 1, 0
          %v465 = vsel %vm449, 1, 0
          %v466 = vsel %vm450, 1, 0
          %v467 = vsel %vm451, 1, 0
          %v468 = vsel %vm452, 1, 0
          %v469 = vsel %vm453, 1, 0
          %v470 = vsel %vm454, 1, 0
          %v471 = vcvt.s32.f32 %v455
          %v472 = vcvt.s32.f32 %v456
          %v473 = vcvt.s32.f32 %v457
          %v474 = vcvt.s32.f32 %v458
          %v475 = vcvt.s32.f32 %v459
          %v476 = vcvt.s32.f32 %v460
          %v477 = vcvt.s32.f32 %v461
          %v478 = vcvt.s32.f32 %v462
          %v479 = vcvt.s32.f32 %v463
          %v480 = vcvt.s32.f32 %v464
          %v481 = vcvt.s32.f32 %v465
          %v482 = vcvt.s32.f32 %v466
          %v483 = vcvt.s32.f32 %v467
          %v484 = vcvt.s32.f32 %v468
          %v485 = vcvt.s32.f32 %v469
          %v486 = vcvt.s32.f32 %v470
          %v487 = vpack.c.bf16 %v472, %v471
          %v488 = vpack.c.bf16 %v474, %v473
          %v489 = vpack.c.bf16 %v476, %v475
          %v490 = vpack.c.bf16 %v478, %v477
          %v491 = vpack.c.bf16 %v480, %v479
          %v492 = vpack.c.bf16 %v482, %v481
          %v493 = vpack.c.bf16 %v484, %v483
          %v494 = vpack.c.bf16 %v486, %v485
          %v495 = vld [vmem:[#allocation2] sm:$0xff]
          %v496 = vld [vmem:[#allocation2 + $0x8] sm:$0xff]
          %v497 = vld [vmem:[#allocation2 + $0x10] sm:$0xff]
          %v498 = vld [vmem:[#allocation2 + $0x18] sm:$0xff]
          %v499 = vld [vmem:[%s282] sm:$0xf]
          %v500 = vld [vmem:[%s282 + $0x4] sm:$0xf]
          %v501 = vld [vmem:[%s282 + $0x8] sm:$0xf]
          %v502 = vld [vmem:[%s282 + $0xc] sm:$0xf]
          %v507 = vunpack.c.l.b16 %v499
          %v508 = vunpack.c.l.b16 %v500
          %v509 = vunpack.c.l.b16 %v501
          %v510 = vunpack.c.l.b16 %v502
          %v511 = vpack.c.b16 %v508, %v507
          %v512 = vpack.c.b16 %v510, %v509
          %515 = vmatprep.subr.bf16.mxu0 0
          %516 = vmatpush1.bf16.msra.mxu0 %v487
          %517 = vmatprep.subr.bf16.mxu0 0
          %518 = vmatpush1.bf16.msra.mxu0 %v488
          %519 = vmatprep.subr.bf16.mxu0 0
          %520 = vmatpush1.bf16.msra.mxu0 %v489
          %521 = vmatprep.subr.bf16.mxu0 0
          %522 = vmatpush1.bf16.msra.mxu0 %v490
          %523 = vmatprep.subr.bf16.mxu0 0
          %524 = vmatpush1.bf16.msra.mxu0 %v491
          %525 = vmatprep.subr.bf16.mxu0 0
          %526 = vmatpush1.bf16.msra.mxu0 %v492
          %527 = vmatprep.subr.bf16.mxu0 0
          %528 = vmatpush1.bf16.msra.mxu0 %v493
          %529 = vmatprep.subr.bf16.mxu0 0
          %530 = vmatpush1.bf16.msra.mxu0 %v494
          %531 = vmatprep.subr.bf16.mxu0 0
          %532 = vmatpush1.bf16.msra.mxu0 0
          %533 = vmatprep.subr.bf16.mxu0 0
          %534 = vmatpush1.bf16.msra.mxu0 0
          %535 = vmatprep.subr.bf16.mxu0 0
          %536 = vmatpush1.bf16.msra.mxu0 0
          %537 = vmatprep.subr.bf16.mxu0 0
          %538 = vmatpush1.bf16.msra.mxu0 0
          %539 = vmatprep.subr.bf16.mxu0 0
          %540 = vmatpush1.bf16.msra.mxu0 0
          %541 = vmatprep.subr.bf16.mxu0 0
          %542 = vmatpush1.bf16.msra.mxu0 0
          %543 = vmatprep.subr.bf16.mxu0 0
          %544 = vmatpush1.bf16.msra.mxu0 0
          %545 = vmatprep.subr.bf16.mxu0 0
          %546 = vmatpush1.bf16.msra.mxu0 0
          %547 = vmatprep.mubr.bf16.mxu0 0
          %548 = vmatmul.mubr.bf16.gmra.mrb[0].mxu0 %v511
          %v549 = vpop.f32.mrb[0].mxu0
          %v550 = vadd.f32 0.0, %v549
          %v551 = vpop.f32.mrb[0].mxu0
          %v552 = vpop.f32.mrb[0].mxu0
          %v553 = vadd.f32 0.0, %v552
          %v554 = vpop.f32.mrb[0].mxu0
          %555 = vmatprep.mubr.bf16.mxu0 0
          %556 = vmatmul.mubr.bf16.gmra.mrb[0].mxu0 %v512
          %v557 = vpop.f32.mrb[0].mxu0
          %v558 = vadd.f32 0.0, %v557
          %v559 = vpop.f32.mrb[0].mxu0
          %v560 = vpop.f32.mrb[0].mxu0
          %v561 = vadd.f32 0.0, %v560
          %v562 = vpop.f32.mrb[0].mxu0
          %563 = vdwg.mxu0
          %v564 = vadd.f32 %v495, %v550
          %v565 = vadd.f32 %v496, %v553
          %v566 = vadd.f32 %v497, %v558
          %v567 = vadd.f32 %v498, %v561
          %568 = vst [vmem:[#allocation2] sm:$0xff] %v564
          %569 = vst [vmem:[#allocation2 + $0x8] sm:$0xff] %v565
          %570 = vst [vmem:[#allocation2 + $0x10] sm:$0xff] %v566
          %571 = vst [vmem:[#allocation2 + $0x18] sm:$0xff] %v567
        $region81: #{tpu_custom_call.1} parent=68 // pred_fallthru
          _
        %p572 = scmp.eq.s32.totalorder %s24, 2
        // Predicated region
        $region82: #{tpu_custom_call.1} parent=68 // pred_check
          %p573 = pneg %p572
        $region83: #{tpu_custom_call.1} parent=68 // pred_check_branch
          %575 = sbr.rel (%p573) target = $region85
        $region84: #{tpu_custom_call.1} parent=68 // pred_region
          %v576 = vld [vmem:[#allocation2] sm:$0xff]
          %v577 = vld [vmem:[#allocation2 + $0x8] sm:$0xff]
          %v578 = vld [vmem:[#allocation2 + $0x10] sm:$0xff]
          %v579 = vld [vmem:[#allocation2 + $0x18] sm:$0xff]
          %v580 = vld [vmem:[%s4] sm:$0xff]
          %v581 = vld [vmem:[%s4 + $0x8] sm:$0xff]
          %v582 = vld [vmem:[%s4 + $0x10] sm:$0xff]
          %v583 = vld [vmem:[%s4 + $0x18] sm:$0xff]
          %585 = vset.pattern.permute.xlu0 0
          %586 = vperm.xlu0 %585, %v580
          %v587 = vpop.permute.xlu0 %586
          %590 = vset.pattern.permute.xlu0 0
          %591 = vperm.xlu0 %590, %v581
          %v592 = vpop.permute.xlu0 %591
          %595 = vset.pattern.permute.xlu0 0
          %596 = vperm.xlu0 %595, %v582
          %v597 = vpop.permute.xlu0 %596
          %600 = vset.pattern.permute.xlu0 0
          %601 = vperm.xlu0 %600, %v583
          %v602 = vpop.permute.xlu0 %601
          %v604 = vmul.f32 %v576, %v587
          %v605 = vmul.f32 %v577, %v592
          %v606 = vmul.f32 %v578, %v597
          %v607 = vmul.f32 %v579, %v602
          %608 = vst [vmem:[#allocation7] sm:$0xff] %v604
          %609 = vst [vmem:[#allocation7 + $0x8] sm:$0xff] %v605
          %610 = vst [vmem:[#allocation7 + $0x10] sm:$0xff] %v606
          %611 = vst [vmem:[#allocation7 + $0x18] sm:$0xff] %v607
        $region85: #{tpu_custom_call.1} parent=68 // pred_fallthru
          _
        // Predicated region
        $region86: #{tpu_custom_call.1} parent=68 // pred_check
          %p612 = pneg %p154
        $region87: #{tpu_custom_call.1} parent=68 // pred_check_branch
          %614 = sbr.rel (%p612) target = $region89
        $region88: #{tpu_custom_call.1} parent=68 // pred_region
          %s616 = ssub.s32 512, 512
          %617 = vsyncadd [#allocation8], %s616
          %s618 = smul.addr %s23, 128
          %s619 = scalar_lea.hbm %s5, %s618
          %s620 = sshll.u32 [#allocation7], 4
          %s621 = int_to_ptr.vmem [resolvable:$true] %s620
          %626 = dma.vmem_to_hbm [thread:$0]  %s621, 512, %s619, [#allocation8], 128, 128, 8
        $region89: #{tpu_custom_call.1} parent=68 // pred_fallthru
          _
        // Predicated region
        $region90: #{tpu_custom_call.1} parent=68 // pred_check
          %p627 = pneg %p154
        $region91: #{tpu_custom_call.1} parent=68 // pred_check_branch
          %629 = sbr.rel (%p627) target = $region93
        $region92: #{tpu_custom_call.1} parent=68 // pred_region
          %630 = dma.done [#allocation8], 512
        $region93: #{tpu_custom_call.1} parent=68 // pred_fallthru
          _
      $region69: #{tpu_custom_call.1} parent=5 // pred_fallthru
        _
      %p631 = scmp.le.s32.totalorder 2, %s14
      // Predicated region
      $region94: #{tpu_custom_call.1} parent=5 // pred_check
        %p632 = pneg %p631
      $region95: #{tpu_custom_call.1} parent=5 // pred_check_branch
        %634 = sbr.rel (%p632) target = $region97
      $region96: #{tpu_custom_call.1} parent=5 // pred_region
        %s635 = ssub.s32 %s14, 2
      $region97: #{tpu_custom_call.1} parent=5 // pred_fallthru
        _
    $region6: #{tpu_custom_call.1} parent=1 // loop_footer
      %s18 = sadd.s32 1, %s14
    $region7: #{tpu_custom_call.1} parent=1 // loop_footer_branch
      %13 = sbr.rel target = $region3
    $region8: #{tpu_custom_call.1} parent=1 // loop_exit
      _
    %636 = vsyncpa [#allocation8], 1
    %s637 = scalar_lea.sflag [#allocation8], 1
    %638 = vsyncpa %s637, 1

</llo_original>
